<compile_context>
chip_gen: v7x
topology: tpu7x:2x2x1
jax: 0.10.0
libtpu: 0.0.40
codegen_flags: <defaults>
</compile_context>

<pallas_src>
import numpy as np
import jax
import jax.numpy as jnp
from jax.experimental import pallas as pl
from jax.experimental.pallas import tpu as pltpu

# ---------------- configuration (mirrors the PyTorch module defaults) ----------------
ATOM_FLOAT_NAMES = ["van_der_waals_radis", "partial_charge", "mass"]
RBF_PARAMS = {
    "van_der_waals_radis": (np.arange(1, 3, 0.2), 10.0),   # 10 centers
    "partial_charge":      (np.arange(-1, 4, 0.25), 10.0), # 20 centers
    "mass":                (np.arange(0, 2, 0.1), 10.0),   # 20 centers
}
EMBED_DIM = 32
C_PACK = 64        # packed center slab: 50 real centers + 14 zero rows (was 128)
MAX_TILE_N = 2048  # upper bound on atoms per grid step (lane dimension of the slab)
LANE = 128


# ---------------------------------- Pallas kernel ------------------------------------
def _atom_float_embed_kernel(xT_ref, sel_ref, cc_ref, ng_ref, wT_ref, bsum_ref, o_ref):
    """One tile of atoms. Compute runs in the transposed (lane-dense) layout,
    the output is stored in the module's natural (atoms, D) layout.

    xT_ref   : (F, TILE_N)      per-feature atom values (atoms along lanes)
    sel_ref  : (C_PACK, F)      one-hot: which feature owns each packed center row
    cc_ref   : (C_PACK, 1)      packed centers (0 on unused rows)
    ng_ref   : (C_PACK, 1)      packed -gamma   (0 on unused rows -> rbf=1, weight col=0)
    wT_ref   : (D, C_PACK)      packed linear weights, transposed (0 cols on unused rows)
    bsum_ref : (1, D)           sum of all per-feature biases
    o_ref    : (TILE_N, D)      output tile (rows are contiguous in the (N, D) HBM array)
    """
    # One-hot selection on the MXU (idle otherwise).  precision=HIGHEST makes the f32
    # chunk decomposition lossless for x*1.0 + x*0.0, so this is (bit-)exact selection.
    x_sel = jnp.dot(sel_ref[...], xT_ref[...],
                    precision=jax.lax.Precision.HIGHEST,
                    preferred_element_type=jnp.float32)          # (C_PACK, TILE_N)

    # Single lane-dense RBF slab: exp(-gamma * (x - c)^2)   (VPU + one EUP exp / elem)
    rbf = jnp.exp(ng_ref[...] * jnp.square(x_sel - cc_ref[...]))  # (C_PACK, TILE_N)

    # Single K=64 matmul covering all features -> (D, TILE_N), then an in-kernel XLU
    # transpose to the (TILE_N, D) output layout plus one pre-summed bias add.
    outT = jnp.dot(wT_ref[...], rbf, preferred_element_type=jnp.float32)  # (D, TILE_N)
    o_ref[...] = outT.T + bsum_ref[...]                                   # (TILE_N, D)


def _choose_tile_n(n):
    """Lane-multiple tile size; >=2 grid steps for moderate N (feeds both v7x cores)."""
    if n <= LANE:
        return LANE
    half = pl.cdiv(n, 2)
    tile = pl.cdiv(half, LANE) * LANE
    return min(tile, MAX_TILE_N)


def atom_float_embedding(feats, params):
    """feats: dict name -> (N,) float32.  Returns (N, D) float32 (module semantics)."""
    sel, cc, ng, wT, b_sum = params
    x = jnp.stack([feats[name] for name in ATOM_FLOAT_NAMES], axis=0).astype(jnp.float32)
    f_dim, n = x.shape
    d = wT.shape[0]

    tile_n = _choose_tile_n(n)
    grid = (pl.cdiv(n, tile_n),)

    cost = pl.CostEstimate(
        flops=2 * n * C_PACK * (f_dim + d),
        transcendentals=n * C_PACK,
        bytes_accessed=4 * (f_dim * n + n * d + C_PACK * (f_dim + 2 + d) + d),
    )

    out = pl.pallas_call(
        _atom_float_embed_kernel,
        out_shape=jax.ShapeDtypeStruct((n, d), jnp.float32),
        grid=grid,
        in_specs=[
            pl.BlockSpec((f_dim, tile_n), lambda i: (0, i)),   # x tile (atoms in lanes)
            pl.BlockSpec((C_PACK, f_dim), lambda i: (0, 0)),   # one-hot selection (resident)
            pl.BlockSpec((C_PACK, 1), lambda i: (0, 0)),       # packed centers
            pl.BlockSpec((C_PACK, 1), lambda i: (0, 0)),       # packed -gamma
            pl.BlockSpec((d, C_PACK), lambda i: (0, 0)),       # packed weights (transposed)
            pl.BlockSpec((1, d), lambda i: (0, 0)),            # summed bias
        ],
        out_specs=pl.BlockSpec((tile_n, d), lambda i: (i, 0)), # natural (N, D) layout
        compiler_params=pltpu.CompilerParams(
            dimension_semantics=("parallel",)),
        cost_estimate=cost,
    )(x, sel, cc, ng, wT, b_sum)

    return out   # already (N, D); no wrapper-side transpose / slice needed


# ------------------------------ parameter construction -------------------------------
def build_params(key, embed_dim):
    """Pack all features' RBF centers / linear params into one 64-row slab."""
    num_feats = len(ATOM_FLOAT_NAMES)
    sel = np.zeros((C_PACK, num_feats), np.float32)
    cc = np.zeros((C_PACK, 1), np.float32)
    ng = np.zeros((C_PACK, 1), np.float32)
    wT = np.zeros((embed_dim, C_PACK), np.float32)   # padded columns stay exactly zero
    b_sum = np.zeros((1, embed_dim), np.float32)
    per_feature = []   # faithful per-feature params for the reference

    off = 0
    for f, name in enumerate(ATOM_FLOAT_NAMES):
        c, g = RBF_PARAMS[name]
        c = np.asarray(c, np.float32)
        nc = c.shape[0]
        # deterministic nn.Linear-style init (uniform in [-1/sqrt(nc), 1/sqrt(nc)])
        key, kw, kb = jax.random.split(key, 3)
        bound = 1.0 / np.sqrt(nc)
        w = np.asarray(jax.random.uniform(kw, (nc, embed_dim), jnp.float32, -bound, bound))
        b = np.asarray(jax.random.uniform(kb, (embed_dim,), jnp.float32, -bound, bound))

        sel[off:off + nc, f] = 1.0
        cc[off:off + nc, 0] = c
        ng[off:off + nc, 0] = -np.float32(g)
        wT[:, off:off + nc] = w.T
        b_sum[0, :] += b
        per_feature.append((c, np.float32(g), w, b))
        off += nc
    assert off <= C_PACK

    params = (jnp.asarray(sel), jnp.asarray(cc), jnp.asarray(ng),
              jnp.asarray(wT), jnp.asarray(b_sum))
    return params, per_feature


def reference(feats, per_feature):
    """Faithful per-feature re-implementation of the PyTorch forward (f32)."""
    out = 0.0
    for f, name in enumerate(ATOM_FLOAT_NAMES):
        c, g, w, b = per_feature[f]
        x = feats[name].reshape(-1, 1)                                    # (N, 1)
        rbf = jnp.exp(-g * jnp.square(x - jnp.asarray(c)[None, :]))       # (N, nc)
        out = out + rbf @ jnp.asarray(w) + jnp.asarray(b)[None, :]
    return out


# ------------------------------------------ main -------------------------------------
if __name__ == "__main__":
    key = jax.random.PRNGKey(0)
    key, kp = jax.random.split(key)
    params, per_feature = build_params(kp, EMBED_DIM)

    # small synthetic per-atom float features; second size exercises the multi-tile
    # ("parallel" grid) and ragged-last-block paths.
    for N in (16, 300):
        key, k1, k2, k3 = jax.random.split(key, 4)
        feats = {
            "van_der_waals_radis": jax.random.uniform(k1, (N,), jnp.float32, 1.0, 3.0),
            "partial_charge":      jax.random.uniform(k2, (N,), jnp.float32, -1.0, 4.0),
            "mass":                jax.random.uniform(k3, (N,), jnp.float32, 0.0, 2.0),
        }

        out = atom_float_embedding(feats, params)
        out = jax.block_until_ready(out)

        ref = reference(feats, per_feature)
        assert out.shape == (N, EMBED_DIM) and out.dtype == jnp.float32
        np.testing.assert_allclose(np.asarray(out), np.asarray(ref), rtol=1e-5, atol=5e-5)

    print("KERNEL_OK")
</pallas_src>

<mosaic_0001>
module attributes {stable_mosaic.version = 11 : i64} {
  func.func @_atom_float_embed_kernel(%arg0: i32, %arg1: memref<3x128xf32, #tpu.memory_space<vmem>>, %arg2: memref<64x3xf32, #tpu.memory_space<vmem>>, %arg3: memref<64x1xf32, #tpu.memory_space<vmem>>, %arg4: memref<64x1xf32, #tpu.memory_space<vmem>>, %arg5: memref<32x64xf32, #tpu.memory_space<vmem>>, %arg6: memref<1x32xf32, #tpu.memory_space<vmem>>, %arg7: memref<128x32xf32, #tpu.memory_space<vmem>>) attributes {dimension_semantics = [#tpu.dimension_semantics<parallel>], iteration_bounds = array<i64: 1>, scalar_prefetch = 0 : i64, scratch_operands = 0 : i64, tpu.core_type = #tpu.core_type<tc>, window_params = [{transform_indices = @transform_0, window_bounds = array<i64: 3, 128>}, {pipeline_mode = #tpu.pipeline_mode<synchronous>, transform_indices = @transform_1, window_bounds = array<i64: 64, 3>}, {pipeline_mode = #tpu.pipeline_mode<synchronous>, transform_indices = @transform_2, window_bounds = array<i64: 64, 1>}, {pipeline_mode = #tpu.pipeline_mode<synchronous>, transform_indices = @transform_3, window_bounds = array<i64: 64, 1>}, {pipeline_mode = #tpu.pipeline_mode<synchronous>, transform_indices = @transform_4, window_bounds = array<i64: 32, 64>}, {pipeline_mode = #tpu.pipeline_mode<synchronous>, transform_indices = @transform_5, window_bounds = array<i64: 1, 32>}, {transform_indices = @transform_6, window_bounds = array<i64: 128, 32>}]} {
    %c0 = arith.constant 0 : index
    %c0_0 = arith.constant 0 : index
    %0 = vector.load %arg2[%c0, %c0_0] : memref<64x3xf32, #tpu.memory_space<vmem>>, vector<64x3xf32>
    %c0_1 = arith.constant 0 : index
    %c0_2 = arith.constant 0 : index
    %1 = vector.load %arg1[%c0_1, %c0_2] : memref<3x128xf32, #tpu.memory_space<vmem>>, vector<3x128xf32>
    %cst = arith.constant dense<0.000000e+00> : vector<64x128xf32>
    %2 = tpu.matmul %0, %1, %cst {dimension_numbers = #tpu.dot_dimension_numbers<[1], [0], [0], [1], [0, 0, 1, 1], [], []>, precision = #tpu.contract_precision<fp32>} : vector<64x3xf32>, vector<3x128xf32>, vector<64x128xf32> -> vector<64x128xf32>
    %c0_3 = arith.constant 0 : index
    %c0_4 = arith.constant 0 : index
    %3 = vector.load %arg4[%c0_3, %c0_4] : memref<64x1xf32, #tpu.memory_space<vmem>>, vector<64x1xf32>
    %c0_5 = arith.constant 0 : index
    %c0_6 = arith.constant 0 : index
    %4 = vector.load %arg3[%c0_5, %c0_6] : memref<64x1xf32, #tpu.memory_space<vmem>>, vector<64x1xf32>
    %5 = vector.broadcast %4 : vector<64x1xf32> to vector<64x128xf32>
    %6 = arith.subf %2, %5 : vector<64x128xf32>
    %7 = arith.mulf %6, %6 : vector<64x128xf32>
    %8 = vector.broadcast %3 : vector<64x1xf32> to vector<64x128xf32>
    %9 = arith.mulf %8, %7 : vector<64x128xf32>
    %10 = math.exp %9 : vector<64x128xf32>
    %c0_7 = arith.constant 0 : index
    %c0_8 = arith.constant 0 : index
    %11 = vector.load %arg5[%c0_7, %c0_8] : memref<32x64xf32, #tpu.memory_space<vmem>>, vector<32x64xf32>
    %cst_9 = arith.constant dense<0.000000e+00> : vector<32x128xf32>
    %12 = tpu.matmul %11, %10, %cst_9 {dimension_numbers = #tpu.dot_dimension_numbers<[1], [0], [0], [1], [0, 0, 1, 1], [], []>} : vector<32x64xf32>, vector<64x128xf32>, vector<32x128xf32> -> vector<32x128xf32>
    %13 = tpu.transpose %12, [1, 0] : vector<32x128xf32> -> vector<128x32xf32>
    %c0_10 = arith.constant 0 : index
    %c0_11 = arith.constant 0 : index
    %14 = vector.load %arg6[%c0_10, %c0_11] : memref<1x32xf32, #tpu.memory_space<vmem>>, vector<1x32xf32>
    %15 = vector.broadcast %14 : vector<1x32xf32> to vector<128x32xf32>
    %16 = arith.addf %13, %15 : vector<128x32xf32>
    %c0_12 = arith.constant 0 : index
    %c0_13 = arith.constant 0 : index
    %17 = vector.load %arg7[%c0_12, %c0_13] : memref<128x32xf32, #tpu.memory_space<vmem>>, vector<128x32xf32>
    tpu.vector_store %arg7[%c0_12, %c0_13], %16 {strides = array<i32>} : memref<128x32xf32, #tpu.memory_space<vmem>>, vector<128x32xf32>,
    return
  }
  func.func @transform_0(%arg0: i32) -> (i32, i32) {
    %c0_i32 = arith.constant 0 : i32
    %c0_i32_0 = arith.constant 0 : i32
    return %c0_i32, %arg0 : i32, i32
  }
  func.func @transform_1(%arg0: i32) -> (i32, i32) {
    %c0_i32 = arith.constant 0 : i32
    %c0_i32_0 = arith.constant 0 : i32
    %c0_i32_1 = arith.constant 0 : i32
    return %c0_i32, %c0_i32_0 : i32, i32
  }
  func.func @transform_2(%arg0: i32) -> (i32, i32) {
    %c0_i32 = arith.constant 0 : i32
    %c0_i32_0 = arith.constant 0 : i32
    %c0_i32_1 = arith.constant 0 : i32
    return %c0_i32, %c0_i32_0 : i32, i32
  }
  func.func @transform_3(%arg0: i32) -> (i32, i32) {
    %c0_i32 = arith.constant 0 : i32
    %c0_i32_0 = arith.constant 0 : i32
    %c0_i32_1 = arith.constant 0 : i32
    return %c0_i32, %c0_i32_0 : i32, i32
  }
  func.func @transform_4(%arg0: i32) -> (i32, i32) {
    %c0_i32 = arith.constant 0 : i32
    %c0_i32_0 = arith.constant 0 : i32
    %c0_i32_1 = arith.constant 0 : i32
    return %c0_i32, %c0_i32_0 : i32, i32
  }
  func.func @transform_5(%arg0: i32) -> (i32, i32) {
    %c0_i32 = arith.constant 0 : i32
    %c0_i32_0 = arith.constant 0 : i32
    %c0_i32_1 = arith.constant 0 : i32
    return %c0_i32, %c0_i32_0 : i32, i32
  }
  func.func @transform_6(%arg0: i32) -> (i32, i32) {
    %c0_i32 = arith.constant 0 : i32
    %c0_i32_0 = arith.constant 0 : i32
    return %arg0, %c0_i32 : i32, i32
  }
}

</mosaic_0001>

<llo_original>
// kernel: tpu_custom_call.1
$region0: #{tpu_custom_call.1}
  #allocation0 [shape = 'u32[]', space=smem, size = 0x4, offset = 0x4, fixed_abs, tag = 'smem constant byte address 0x4 - core index']
  #allocation1 [shape = 'u32[144,128]{1,0:T(1,128)}', space=vmem, size = 0x12000, scoped, tag = 'internal scratch']
  %s0 = inlined_call_operand.vmem [shape: f32[3,16], index: 0, kind: input, shape index: {}]
  %s1 = inlined_call_operand.vmem [shape: f32[64,3], index: 1, kind: input, shape index: {}]
  %s2 = inlined_call_operand.vmem [shape: f32[64,1], index: 2, kind: input, shape index: {}]
  %s3 = inlined_call_operand.vmem [shape: f32[64,1], index: 3, kind: input, shape index: {}]
  %s4 = inlined_call_operand.vmem [shape: f32[32,64], index: 4, kind: input, shape index: {}]
  %s5 = inlined_call_operand.vmem [shape: f32[1,32], index: 5, kind: input, shape index: {}]
  %s6 = inlined_call_operand.hbm [shape: f32[16,32], index: 6, kind: output, shape index: {}]
  %s7 = sld [smem:[#allocation0]]
  $region34: #{tpu_custom_call.1} parent=0
    _
  %s9 = ssub.s32 1, %s7
  %s10 = scalar_select 0, %s9, %s7
  $region1: #{tpu_custom_call.1} parent=0
    #allocation2 [shape = 'u8[65536]{0}', space=vmem, size = 0x10000, scoped, tag = 'output window, operand 0, single buffered']
    #allocation3 [shape = 's32[1]{0}', space=sflag, size = 0x4, scoped, tag = 'scoped memory for tpu_custom_call.1']
    %11 = vsyncpa [#allocation3], 0
    // Predicated region
    $region2: #{tpu_custom_call.1} parent=1 // pred_check
      _
    $region3: #{tpu_custom_call.1} parent=1 // pred_check_branch
      %13 = sbr.rel (0) target = $region5
    $region4: #{tpu_custom_call.1} parent=1 // pred_region
      _
    $region5: #{tpu_custom_call.1} parent=1 // pred_fallthru
      _
    // Predicated region
    $region6: #{tpu_custom_call.1} parent=1 // pred_check
      _
    $region7: #{tpu_custom_call.1} parent=1 // pred_check_branch
      %15 = sbr.rel (0) target = $region9
    $region8: #{tpu_custom_call.1} parent=1 // pred_region
      _
    $region9: #{tpu_custom_call.1} parent=1 // pred_fallthru
      _
    // Predicated region
    $region10: #{tpu_custom_call.1} parent=1 // pred_check
      _
    $region11: #{tpu_custom_call.1} parent=1 // pred_check_branch
      %17 = sbr.rel (0) target = $region13
    $region12: #{tpu_custom_call.1} parent=1 // pred_region
      _
    $region13: #{tpu_custom_call.1} parent=1 // pred_fallthru
      _
    // Predicated region
    $region14: #{tpu_custom_call.1} parent=1 // pred_check
      _
    $region15: #{tpu_custom_call.1} parent=1 // pred_check_branch
      %19 = sbr.rel (0) target = $region17
    $region16: #{tpu_custom_call.1} parent=1 // pred_region
      _
    $region17: #{tpu_custom_call.1} parent=1 // pred_fallthru
      _
    // Predicated region
    $region18: #{tpu_custom_call.1} parent=1 // pred_check
      _
    $region19: #{tpu_custom_call.1} parent=1 // pred_check_branch
      %21 = sbr.rel (0) target = $region21
    $region20: #{tpu_custom_call.1} parent=1 // pred_region
      _
    $region21: #{tpu_custom_call.1} parent=1 // pred_fallthru
      _
    // Predicated region
    $region22: #{tpu_custom_call.1} parent=1 // pred_check
      _
    $region23: #{tpu_custom_call.1} parent=1 // pred_check_branch
      %23 = sbr.rel (0) target = $region25
    $region24: #{tpu_custom_call.1} parent=1 // pred_region
      _
    $region25: #{tpu_custom_call.1} parent=1 // pred_fallthru
      _
    %v24 = vld [vmem:[%s1] sm:$0xff]
    %v25 = vld [vmem:[%s1 + $0x8] sm:$0xff]
    %v26 = vld [vmem:[%s1 + $0x10] sm:$0xff]
    %v27 = vld [vmem:[%s1 + $0x18] sm:$0xff]
    %v28 = vld [vmem:[%s1 + $0x20] sm:$0xff]
    %v29 = vld [vmem:[%s1 + $0x28] sm:$0xff]
    %v30 = vld [vmem:[%s1 + $0x30] sm:$0xff]
    %v31 = vld [vmem:[%s1 + $0x38] sm:$0xff]
    %v32 = vld [vmem:[%s0] sm:$0x7]
    %vm33 = vcmask 23552
    %v35 = vsel %vm33, %v24, 0
    %v38 = vsel %vm33, %v25, 0
    %v41 = vsel %vm33, %v26, 0
    %v44 = vsel %vm33, %v27, 0
    %v47 = vsel %vm33, %v28, 0
    %v50 = vsel %vm33, %v29, 0
    %v53 = vsel %vm33, %v30, 0
    %v56 = vsel %vm33, %v31, 0
    %vm58 = vcmask 1042432
    %v60 = vsel %vm58, %v32, 0
    %62 = vmatprep.subr.mxu0 0.0
    %v63 = vand.u32 %v60, 4294901760
    %64 = vmatpush1.msra.mxu0 %v63
    %65 = vmatprep.subr.mxu0 0.0
    %66 = vmatpush1.msra.mxu0 0.0
    %67 = vmatprep.subr.mxu0 0.0
    %68 = vmatpush1.msra.mxu0 0.0
    %69 = vmatprep.subr.mxu0 0.0
    %70 = vmatpush1.msra.mxu0 0.0
    %71 = vmatprep.subr.mxu0 0.0
    %72 = vmatpush1.msra.mxu0 0.0
    %73 = vmatprep.subr.mxu0 0.0
    %74 = vmatpush1.msra.mxu0 0.0
    %75 = vmatprep.subr.mxu0 0.0
    %76 = vmatpush1.msra.mxu0 0.0
    %77 = vmatprep.subr.mxu0 0.0
    %78 = vmatpush1.msra.mxu0 0.0
    %79 = vmatprep.subr.mxu0 0.0
    %80 = vmatpush1.msra.mxu0 0.0
    %81 = vmatprep.subr.mxu0 0.0
    %82 = vmatpush1.msra.mxu0 0.0
    %83 = vmatprep.subr.mxu0 0.0
    %84 = vmatpush1.msra.mxu0 0.0
    %85 = vmatprep.subr.mxu0 0.0
    %86 = vmatpush1.msra.mxu0 0.0
    %87 = vmatprep.subr.mxu0 0.0
    %88 = vmatpush1.msra.mxu0 0.0
    %89 = vmatprep.subr.mxu0 0.0
    %90 = vmatpush1.msra.mxu0 0.0
    %91 = vmatprep.subr.mxu0 0.0
    %92 = vmatpush1.msra.mxu0 0.0
    %93 = vmatprep.subr.mxu0 0.0
    %94 = vmatpush1.msra.mxu0 0.0
    %95 = vmatprep.subr.mxu0 0.0
    %96 = vmatpush1.msra.mxu0 0.0
    %97 = vmatprep.subr.mxu0 0.0
    %98 = vmatpush1.msra.mxu0 0.0
    %99 = vmatprep.subr.mxu0 0.0
    %100 = vmatpush1.msra.mxu0 0.0
    %101 = vmatprep.subr.mxu0 0.0
    %102 = vmatpush1.msra.mxu0 0.0
    %103 = vmatprep.subr.mxu0 0.0
    %104 = vmatpush1.msra.mxu0 0.0
    %105 = vmatprep.subr.mxu0 0.0
    %106 = vmatpush1.msra.mxu0 0.0
    %107 = vmatprep.subr.mxu0 0.0
    %108 = vmatpush1.msra.mxu0 0.0
    %109 = vmatprep.subr.mxu0 0.0
    %110 = vmatpush1.msra.mxu0 0.0
    %111 = vmatprep.subr.mxu0 0.0
    %112 = vmatpush1.msra.mxu0 0.0
    %113 = vmatprep.subr.mxu0 0.0
    %114 = vmatpush1.msra.mxu0 0.0
    %115 = vmatprep.subr.mxu0 0.0
    %116 = vmatpush1.msra.mxu0 0.0
    %117 = vmatprep.subr.mxu0 0.0
    %118 = vmatpush1.msra.mxu0 0.0
    %119 = vmatprep.subr.mxu0 0.0
    %120 = vmatpush1.msra.mxu0 0.0
    %121 = vmatprep.subr.mxu0 0.0
    %122 = vmatpush1.msra.mxu0 0.0
    %123 = vmatprep.subr.mxu0 0.0
    %124 = vmatpush1.msra.mxu0 0.0
    %125 = vmatprep.subr.mxu0 0.0
    %126 = vmatpush1.msra.mxu0 0.0
    %127 = vmatprep.mubr.f32.mxu0 0.0
    %v128 = vand.u32 %v35, 4294901760
    %v129 = vsub.f32 %v35, %v128
    %v130 = vand.u32 %v129, 4294901760
    %v131 = vsub.f32 %v129, %v130
    %v132 = vand.u32 %v131, 4294901760
    %133 = vmatmul.mubr.f32.gmra.mrb[0].mxu0 %v132
    %v134 = vpop.f32.mrb[0].mxu0
    %v135 = vadd.f32 0.0, %v134
    %v136 = vpop.f32.mrb[0].mxu0
    %137 = vmatprep.mubr.f32.mxu0 0.0
    %v138 = vand.u32 %v38, 4294901760
    %v139 = vsub.f32 %v38, %v138
    %v140 = vand.u32 %v139, 4294901760
    %v141 = vsub.f32 %v139, %v140
    %v142 = vand.u32 %v141, 4294901760
    %143 = vmatmul.mubr.f32.gmra.mrb[0].mxu0 %v142
    %v144 = vpop.f32.mrb[0].mxu0
    %v145 = vadd.f32 0.0, %v144
    %v146 = vpop.f32.mrb[0].mxu0
    %147 = vmatprep.mubr.f32.mxu0 0.0
    %v148 = vand.u32 %v41, 4294901760
    %v149 = vsub.f32 %v41, %v148
    %v150 = vand.u32 %v149, 4294901760
    %v151 = vsub.f32 %v149, %v150
    %v152 = vand.u32 %v151, 4294901760
    %153 = vmatmul.mubr.f32.gmra.mrb[0].mxu0 %v152
    %v154 = vpop.f32.mrb[0].mxu0
    %v155 = vadd.f32 0.0, %v154
    %v156 = vpop.f32.mrb[0].mxu0
    %157 = vmatprep.mubr.f32.mxu0 0.0
    %v158 = vand.u32 %v44, 4294901760
    %v159 = vsub.f32 %v44, %v158
    %v160 = vand.u32 %v159, 4294901760
    %v161 = vsub.f32 %v159, %v160
    %v162 = vand.u32 %v161, 4294901760
    %163 = vmatmul.mubr.f32.gmra.mrb[0].mxu0 %v162
    %v164 = vpop.f32.mrb[0].mxu0
    %v165 = vadd.f32 0.0, %v164
    %v166 = vpop.f32.mrb[0].mxu0
    %167 = vmatprep.mubr.f32.mxu0 0.0
    %v168 = vand.u32 %v47, 4294901760
    %v169 = vsub.f32 %v47, %v168
    %v170 = vand.u32 %v169, 4294901760
    %v171 = vsub.f32 %v169, %v170
    %v172 = vand.u32 %v171, 4294901760
    %173 = vmatmul.mubr.f32.gmra.mrb[0].mxu0 %v172
    %v174 = vpop.f32.mrb[0].mxu0
    %v175 = vadd.f32 0.0, %v174
    %v176 = vpop.f32.mrb[0].mxu0
    %177 = vmatprep.mubr.f32.mxu0 0.0
    %v178 = vand.u32 %v50, 4294901760
    %v179 = vsub.f32 %v50, %v178
    %v180 = vand.u32 %v179, 4294901760
    %v181 = vsub.f32 %v179, %v180
    %v182 = vand.u32 %v181, 4294901760
    %183 = vmatmul.mubr.f32.gmra.mrb[0].mxu0 %v182
    %v184 = vpop.f32.mrb[0].mxu0
    %v185 = vadd.f32 0.0, %v184
    %v186 = vpop.f32.mrb[0].mxu0
    %187 = vmatprep.mubr.f32.mxu0 0.0
    %v188 = vand.u32 %v53, 4294901760
    %v189 = vsub.f32 %v53, %v188
    %v190 = vand.u32 %v189, 4294901760
    %v191 = vsub.f32 %v189, %v190
    %v192 = vand.u32 %v191, 4294901760
    %193 = vmatmul.mubr.f32.gmra.mrb[0].mxu0 %v192
    %v194 = vpop.f32.mrb[0].mxu0
    %v195 = vadd.f32 0.0, %v194
    %v196 = vpop.f32.mrb[0].mxu0
    %197 = vmatprep.mubr.f32.mxu0 0.0
    %v198 = vand.u32 %v56, 4294901760
    %v199 = vsub.f32 %v56, %v198
    %v200 = vand.u32 %v199, 4294901760
    %v201 = vsub.f32 %v199, %v200
    %v202 = vand.u32 %v201, 4294901760
    %203 = vmatmul.mubr.f32.gmra.mrb[0].mxu0 %v202
    %v204 = vpop.f32.mrb[0].mxu0
    %v205 = vadd.f32 0.0, %v204
    %v206 = vpop.f32.mrb[0].mxu0
    %207 = vdwg.mxu0
    %208 = vmatprep.subr.mxu0 0.0
    %v209 = vand.u32 %v60, 4294901760
    %v210 = vsub.f32 %v60, %v209
    %v211 = vand.u32 %v210, 4294901760
    %v212 = vsub.f32 %v210, %v211
    %v213 = vand.u32 %v212, 4294901760
    %214 = vmatpush1.msra.mxu0 %v213
    %215 = vmatprep.subr.mxu0 0.0
    %216 = vmatpush1.msra.mxu0 0.0
    %217 = vmatprep.subr.mxu0 0.0
    %218 = vmatpush1.msra.mxu0 0.0
    %219 = vmatprep.subr.mxu0 0.0
    %220 = vmatpush1.msra.mxu0 0.0
    %221 = vmatprep.subr.mxu0 0.0
    %222 = vmatpush1.msra.mxu0 0.0
    %223 = vmatprep.subr.mxu0 0.0
    %224 = vmatpush1.msra.mxu0 0.0
    %225 = vmatprep.subr.mxu0 0.0
    %226 = vmatpush1.msra.mxu0 0.0
    %227 = vmatprep.subr.mxu0 0.0
    %228 = vmatpush1.msra.mxu0 0.0
    %229 = vmatprep.subr.mxu0 0.0
    %230 = vmatpush1.msra.mxu0 0.0
    %231 = vmatprep.subr.mxu0 0.0
    %232 = vmatpush1.msra.mxu0 0.0
    %233 = vmatprep.subr.mxu0 0.0
    %234 = vmatpush1.msra.mxu0 0.0
    %235 = vmatprep.subr.mxu0 0.0
    %236 = vmatpush1.msra.mxu0 0.0
    %237 = vmatprep.subr.mxu0 0.0
    %238 = vmatpush1.msra.mxu0 0.0
    %239 = vmatprep.subr.mxu0 0.0
    %240 = vmatpush1.msra.mxu0 0.0
    %241 = vmatprep.subr.mxu0 0.0
    %242 = vmatpush1.msra.mxu0 0.0
    %243 = vmatprep.subr.mxu0 0.0
    %244 = vmatpush1.msra.mxu0 0.0
    %245 = vmatprep.subr.mxu0 0.0
    %246 = vmatpush1.msra.mxu0 0.0
    %247 = vmatprep.subr.mxu0 0.0
    %248 = vmatpush1.msra.mxu0 0.0
    %249 = vmatprep.subr.mxu0 0.0
    %250 = vmatpush1.msra.mxu0 0.0
    %251 = vmatprep.subr.mxu0 0.0
    %252 = vmatpush1.msra.mxu0 0.0
    %253 = vmatprep.subr.mxu0 0.0
    %254 = vmatpush1.msra.mxu0 0.0
    %255 = vmatprep.subr.mxu0 0.0
    %256 = vmatpush1.msra.mxu0 0.0
    %257 = vmatprep.subr.mxu0 0.0
    %258 = vmatpush1.msra.mxu0 0.0
    %259 = vmatprep.subr.mxu0 0.0
    %260 = vmatpush1.msra.mxu0 0.0
    %261 = vmatprep.subr.mxu0 0.0
    %262 = vmatpush1.msra.mxu0 0.0
    %263 = vmatprep.subr.mxu0 0.0
    %264 = vmatpush1.msra.mxu0 0.0
    %265 = vmatprep.subr.mxu0 0.0
    %266 = vmatpush1.msra.mxu0 0.0
    %267 = vmatprep.subr.mxu0 0.0
    %268 = vmatpush1.msra.mxu0 0.0
    %269 = vmatprep.subr.mxu0 0.0
    %270 = vmatpush1.msra.mxu0 0.0
    %271 = vmatprep.subr.mxu0 0.0
    %272 = vmatpush1.msra.mxu0 0.0
    %273 = vmatprep.subr.mxu0 0.0
    %274 = vmatpush1.msra.mxu0 0.0
    %275 = vmatprep.subr.mxu0 0.0
    %276 = vmatpush1.msra.mxu0 0.0
    %277 = vmatprep.mubr.f32.mxu0 0.0
    %v278 = vand.u32 %v35, 4294901760
    %279 = vmatmul.mubr.f32.gmra.mrb[0].mxu0 %v278
    %v280 = vpop.f32.mrb[0].mxu0
    %v281 = vadd.f32 %v135, %v280
    %v282 = vpop.f32.mrb[0].mxu0
    %283 = vmatprep.mubr.f32.mxu0 0.0
    %v284 = vand.u32 %v38, 4294901760
    %285 = vmatmul.mubr.f32.gmra.mrb[0].mxu0 %v284
    %v286 = vpop.f32.mrb[0].mxu0
    %v287 = vadd.f32 %v145, %v286
    %v288 = vpop.f32.mrb[0].mxu0
    %289 = vmatprep.mubr.f32.mxu0 0.0
    %v290 = vand.u32 %v41, 4294901760
    %291 = vmatmul.mubr.f32.gmra.mrb[0].mxu0 %v290
    %v292 = vpop.f32.mrb[0].mxu0
    %v293 = vadd.f32 %v155, %v292
    %v294 = vpop.f32.mrb[0].mxu0
    %295 = vmatprep.mubr.f32.mxu0 0.0
    %v296 = vand.u32 %v44, 4294901760
    %297 = vmatmul.mubr.f32.gmra.mrb[0].mxu0 %v296
    %v298 = vpop.f32.mrb[0].mxu0
    %v299 = vadd.f32 %v165, %v298
    %v300 = vpop.f32.mrb[0].mxu0
    %301 = vmatprep.mubr.f32.mxu0 0.0
    %v302 = vand.u32 %v47, 4294901760
    %303 = vmatmul.mubr.f32.gmra.mrb[0].mxu0 %v302
    %v304 = vpop.f32.mrb[0].mxu0
    %v305 = vadd.f32 %v175, %v304
    %v306 = vpop.f32.mrb[0].mxu0
    %307 = vmatprep.mubr.f32.mxu0 0.0
    %v308 = vand.u32 %v50, 4294901760
    %309 = vmatmul.mubr.f32.gmra.mrb[0].mxu0 %v308
    %v310 = vpop.f32.mrb[0].mxu0
    %v311 = vadd.f32 %v185, %v310
    %v312 = vpop.f32.mrb[0].mxu0
    %313 = vmatprep.mubr.f32.mxu0 0.0
    %v314 = vand.u32 %v53, 4294901760
    %315 = vmatmul.mubr.f32.gmra.mrb[0].mxu0 %v314
    %v316 = vpop.f32.mrb[0].mxu0
    %v317 = vadd.f32 %v195, %v316
    %v318 = vpop.f32.mrb[0].mxu0
    %319 = vmatprep.mubr.f32.mxu0 0.0
    %v320 = vand.u32 %v56, 4294901760
    %321 = vmatmul.mubr.f32.gmra.mrb[0].mxu0 %v320
    %v322 = vpop.f32.mrb[0].mxu0
    %v323 = vadd.f32 %v205, %v322
    %v324 = vpop.f32.mrb[0].mxu0
    %325 = vdwg.mxu0
    %326 = vmatprep.subr.mxu0 0.0
    %v327 = vand.u32 %v60, 4294901760
    %v328 = vsub.f32 %v60, %v327
    %329 = vmatpush1.msra.mxu0 %v328
    %330 = vmatprep.subr.mxu0 0.0
    %331 = vmatpush1.msra.mxu0 0.0
    %332 = vmatprep.subr.mxu0 0.0
    %333 = vmatpush1.msra.mxu0 0.0
    %334 = vmatprep.subr.mxu0 0.0
    %335 = vmatpush1.msra.mxu0 0.0
    %336 = vmatprep.subr.mxu0 0.0
    %337 = vmatpush1.msra.mxu0 0.0
    %338 = vmatprep.subr.mxu0 0.0
    %339 = vmatpush1.msra.mxu0 0.0
    %340 = vmatprep.subr.mxu0 0.0
    %341 = vmatpush1.msra.mxu0 0.0
    %342 = vmatprep.subr.mxu0 0.0
    %343 = vmatpush1.msra.mxu0 0.0
    %344 = vmatprep.subr.mxu0 0.0
    %345 = vmatpush1.msra.mxu0 0.0
    %346 = vmatprep.subr.mxu0 0.0
    %347 = vmatpush1.msra.mxu0 0.0
    %348 = vmatprep.subr.mxu0 0.0
    %349 = vmatpush1.msra.mxu0 0.0
    %350 = vmatprep.subr.mxu0 0.0
    %351 = vmatpush1.msra.mxu0 0.0
    %352 = vmatprep.subr.mxu0 0.0
    %353 = vmatpush1.msra.mxu0 0.0
    %354 = vmatprep.subr.mxu0 0.0
    %355 = vmatpush1.msra.mxu0 0.0
    %356 = vmatprep.subr.mxu0 0.0
    %357 = vmatpush1.msra.mxu0 0.0
    %358 = vmatprep.subr.mxu0 0.0
    %359 = vmatpush1.msra.mxu0 0.0
    %360 = vmatprep.subr.mxu0 0.0
    %361 = vmatpush1.msra.mxu0 0.0
    %362 = vmatprep.subr.mxu0 0.0
    %363 = vmatpush1.msra.mxu0 0.0
    %364 = vmatprep.subr.mxu0 0.0
    %365 = vmatpush1.msra.mxu0 0.0
    %366 = vmatprep.subr.mxu0 0.0
    %367 = vmatpush1.msra.mxu0 0.0
    %368 = vmatprep.subr.mxu0 0.0
    %369 = vmatpush1.msra.mxu0 0.0
    %370 = vmatprep.subr.mxu0 0.0
    %371 = vmatpush1.msra.mxu0 0.0
    %372 = vmatprep.subr.mxu0 0.0
    %373 = vmatpush1.msra.mxu0 0.0
    %374 = vmatprep.subr.mxu0 0.0
    %375 = vmatpush1.msra.mxu0 0.0
    %376 = vmatprep.subr.mxu0 0.0
    %377 = vmatpush1.msra.mxu0 0.0
    %378 = vmatprep.subr.mxu0 0.0
    %379 = vmatpush1.msra.mxu0 0.0
    %380 = vmatprep.subr.mxu0 0.0
    %381 = vmatpush1.msra.mxu0 0.0
    %382 = vmatprep.subr.mxu0 0.0
    %383 = vmatpush1.msra.mxu0 0.0
    %384 = vmatprep.subr.mxu0 0.0
    %385 = vmatpush1.msra.mxu0 0.0
    %386 = vmatprep.subr.mxu0 0.0
    %387 = vmatpush1.msra.mxu0 0.0
    %388 = vmatprep.subr.mxu0 0.0
    %389 = vmatpush1.msra.mxu0 0.0
    %390 = vmatprep.subr.mxu0 0.0
    %391 = vmatpush1.msra.mxu0 0.0
    %392 = vmatprep.mubr.f32.mxu0 0.0
    %v393 = vand.u32 %v35, 4294901760
    %v394 = vsub.f32 %v35, %v393
    %395 = vmatmul.mubr.f32.gmra.mrb[0].mxu0 %v394
    %v396 = vpop.f32.mrb[0].mxu0
    %v397 = vadd.f32 %v281, %v396
    %v398 = vpop.f32.mrb[0].mxu0
    %399 = vmatprep.mubr.f32.mxu0 0.0
    %v400 = vand.u32 %v38, 4294901760
    %v401 = vsub.f32 %v38, %v400
    %402 = vmatmul.mubr.f32.gmra.mrb[0].mxu0 %v401
    %v403 = vpop.f32.mrb[0].mxu0
    %v404 = vadd.f32 %v287, %v403
    %v405 = vpop.f32.mrb[0].mxu0
    %406 = vmatprep.mubr.f32.mxu0 0.0
    %v407 = vand.u32 %v41, 4294901760
    %v408 = vsub.f32 %v41, %v407
    %409 = vmatmul.mubr.f32.gmra.mrb[0].mxu0 %v408
    %v410 = vpop.f32.mrb[0].mxu0
    %v411 = vadd.f32 %v293, %v410
    %v412 = vpop.f32.mrb[0].mxu0
    %413 = vmatprep.mubr.f32.mxu0 0.0
    %v414 = vand.u32 %v44, 4294901760
    %v415 = vsub.f32 %v44, %v414
    %416 = vmatmul.mubr.f32.gmra.mrb[0].mxu0 %v415
    %v417 = vpop.f32.mrb[0].mxu0
    %v418 = vadd.f32 %v299, %v417
    %v419 = vpop.f32.mrb[0].mxu0
    %420 = vmatprep.mubr.f32.mxu0 0.0
    %v421 = vand.u32 %v47, 4294901760
    %v422 = vsub.f32 %v47, %v421
    %423 = vmatmul.mubr.f32.gmra.mrb[0].mxu0 %v422
    %v424 = vpop.f32.mrb[0].mxu0
    %v425 = vadd.f32 %v305, %v424
    %v426 = vpop.f32.mrb[0].mxu0
    %427 = vmatprep.mubr.f32.mxu0 0.0
    %v428 = vand.u32 %v50, 4294901760
    %v429 = vsub.f32 %v50, %v428
    %430 = vmatmul.mubr.f32.gmra.mrb[0].mxu0 %v429
    %v431 = vpop.f32.mrb[0].mxu0
    %v432 = vadd.f32 %v311, %v431
    %v433 = vpop.f32.mrb[0].mxu0
    %434 = vmatprep.mubr.f32.mxu0 0.0
    %v435 = vand.u32 %v53, 4294901760
    %v436 = vsub.f32 %v53, %v435
    %437 = vmatmul.mubr.f32.gmra.mrb[0].mxu0 %v436
    %v438 = vpop.f32.mrb[0].mxu0
    %v439 = vadd.f32 %v317, %v438
    %v440 = vpop.f32.mrb[0].mxu0
    %441 = vmatprep.mubr.f32.mxu0 0.0
    %v442 = vand.u32 %v56, 4294901760
    %v443 = vsub.f32 %v56, %v442
    %444 = vmatmul.mubr.f32.gmra.mrb[0].mxu0 %v443
    %v445 = vpop.f32.mrb[0].mxu0
    %v446 = vadd.f32 %v323, %v445
    %v447 = vpop.f32.mrb[0].mxu0
    %448 = vdwg.mxu0
    %449 = vmatprep.subr.mxu0 0.0
    %v450 = vand.u32 %v60, 4294901760
    %451 = vmatpush1.msra.mxu0 %v450
    %452 = vmatprep.subr.mxu0 0.0
    %453 = vmatpush1.msra.mxu0 0.0
    %454 = vmatprep.subr.mxu0 0.0
    %455 = vmatpush1.msra.mxu0 0.0
    %456 = vmatprep.subr.mxu0 0.0
    %457 = vmatpush1.msra.mxu0 0.0
    %458 = vmatprep.subr.mxu0 0.0
    %459 = vmatpush1.msra.mxu0 0.0
    %460 = vmatprep.subr.mxu0 0.0
    %461 = vmatpush1.msra.mxu0 0.0
    %462 = vmatprep.subr.mxu0 0.0
    %463 = vmatpush1.msra.mxu0 0.0
    %464 = vmatprep.subr.mxu0 0.0
    %465 = vmatpush1.msra.mxu0 0.0
    %466 = vmatprep.subr.mxu0 0.0
    %467 = vmatpush1.msra.mxu0 0.0
    %468 = vmatprep.subr.mxu0 0.0
    %469 = vmatpush1.msra.mxu0 0.0
    %470 = vmatprep.subr.mxu0 0.0
    %471 = vmatpush1.msra.mxu0 0.0
    %472 = vmatprep.subr.mxu0 0.0
    %473 = vmatpush1.msra.mxu0 0.0
    %474 = vmatprep.subr.mxu0 0.0
    %475 = vmatpush1.msra.mxu0 0.0
    %476 = vmatprep.subr.mxu0 0.0
    %477 = vmatpush1.msra.mxu0 0.0
    %478 = vmatprep.subr.mxu0 0.0
    %479 = vmatpush1.msra.mxu0 0.0
    %480 = vmatprep.subr.mxu0 0.0
    %481 = vmatpush1.msra.mxu0 0.0
    %482 = vmatprep.subr.mxu0 0.0
    %483 = vmatpush1.msra.mxu0 0.0
    %484 = vmatprep.subr.mxu0 0.0
    %485 = vmatpush1.msra.mxu0 0.0
    %486 = vmatprep.subr.mxu0 0.0
    %487 = vmatpush1.msra.mxu0 0.0
    %488 = vmatprep.subr.mxu0 0.0
    %489 = vmatpush1.msra.mxu0 0.0
    %490 = vmatprep.subr.mxu0 0.0
    %491 = vmatpush1.msra.mxu0 0.0
    %492 = vmatprep.subr.mxu0 0.0
    %493 = vmatpush1.msra.mxu0 0.0
    %494 = vmatprep.subr.mxu0 0.0
    %495 = vmatpush1.msra.mxu0 0.0
    %496 = vmatprep.subr.mxu0 0.0
    %497 = vmatpush1.msra.mxu0 0.0
    %498 = vmatprep.subr.mxu0 0.0
    %499 = vmatpush1.msra.mxu0 0.0
    %500 = vmatprep.subr.mxu0 0.0
    %501 = vmatpush1.msra.mxu0 0.0
    %502 = vmatprep.subr.mxu0 0.0
    %503 = vmatpush1.msra.mxu0 0.0
    %504 = vmatprep.subr.mxu0 0.0
    %505 = vmatpush1.msra.mxu0 0.0
    %506 = vmatprep.subr.mxu0 0.0
    %507 = vmatpush1.msra.mxu0 0.0
    %508 = vmatprep.subr.mxu0 0.0
    %509 = vmatpush1.msra.mxu0 0.0
    %510 = vmatprep.subr.mxu0 0.0
    %511 = vmatpush1.msra.mxu0 0.0
    %512 = vmatprep.subr.mxu0 0.0
    %513 = vmatpush1.msra.mxu0 0.0
    %514 = vmatprep.mubr.f32.mxu0 0.0
    %v515 = vand.u32 %v35, 4294901760
    %v516 = vsub.f32 %v35, %v515
    %v517 = vand.u32 %v516, 4294901760
    %518 = vmatmul.mubr.f32.gmra.mrb[0].mxu0 %v517
    %v519 = vpop.f32.mrb[0].mxu0
    %v520 = vadd.f32 %v397, %v519
    %v521 = vpop.f32.mrb[0].mxu0
    %522 = vmatprep.mubr.f32.mxu0 0.0
    %v523 = vand.u32 %v38, 4294901760
    %v524 = vsub.f32 %v38, %v523
    %v525 = vand.u32 %v524, 4294901760
    %526 = vmatmul.mubr.f32.gmra.mrb[0].mxu0 %v525
    %v527 = vpop.f32.mrb[0].mxu0
    %v528 = vadd.f32 %v404, %v527
    %v529 = vpop.f32.mrb[0].mxu0
    %530 = vmatprep.mubr.f32.mxu0 0.0
    %v531 = vand.u32 %v41, 4294901760
    %v532 = vsub.f32 %v41, %v531
    %v533 = vand.u32 %v532, 4294901760
    %534 = vmatmul.mubr.f32.gmra.mrb[0].mxu0 %v533
    %v535 = vpop.f32.mrb[0].mxu0
    %v536 = vadd.f32 %v411, %v535
    %v537 = vpop.f32.mrb[0].mxu0
    %538 = vmatprep.mubr.f32.mxu0 0.0
    %v539 = vand.u32 %v44, 4294901760
    %v540 = vsub.f32 %v44, %v539
    %v541 = vand.u32 %v540, 4294901760
    %542 = vmatmul.mubr.f32.gmra.mrb[0].mxu0 %v541
    %v543 = vpop.f32.mrb[0].mxu0
    %v544 = vadd.f32 %v418, %v543
    %v545 = vpop.f32.mrb[0].mxu0
    %546 = vmatprep.mubr.f32.mxu0 0.0
    %v547 = vand.u32 %v47, 4294901760
    %v548 = vsub.f32 %v47, %v547
    %v549 = vand.u32 %v548, 4294901760
    %550 = vmatmul.mubr.f32.gmra.mrb[0].mxu0 %v549
    %v551 = vpop.f32.mrb[0].mxu0
    %v552 = vadd.f32 %v425, %v551
    %v553 = vpop.f32.mrb[0].mxu0
    %554 = vmatprep.mubr.f32.mxu0 0.0
    %v555 = vand.u32 %v50, 4294901760
    %v556 = vsub.f32 %v50, %v555
    %v557 = vand.u32 %v556, 4294901760
    %558 = vmatmul.mubr.f32.gmra.mrb[0].mxu0 %v557
    %v559 = vpop.f32.mrb[0].mxu0
    %v560 = vadd.f32 %v432, %v559
    %v561 = vpop.f32.mrb[0].mxu0
    %562 = vmatprep.mubr.f32.mxu0 0.0
    %v563 = vand.u32 %v53, 4294901760
    %v564 = vsub.f32 %v53, %v563
    %v565 = vand.u32 %v564, 4294901760
    %566 = vmatmul.mubr.f32.gmra.mrb[0].mxu0 %v565
    %v567 = vpop.f32.mrb[0].mxu0
    %v568 = vadd.f32 %v439, %v567
    %v569 = vpop.f32.mrb[0].mxu0
    %570 = vmatprep.mubr.f32.mxu0 0.0
    %v571 = vand.u32 %v56, 4294901760
    %v572 = vsub.f32 %v56, %v571
    %v573 = vand.u32 %v572, 4294901760
    %574 = vmatmul.mubr.f32.gmra.mrb[0].mxu0 %v573
    %v575 = vpop.f32.mrb[0].mxu0
    %v576 = vadd.f32 %v446, %v575
    %v577 = vpop.f32.mrb[0].mxu0
    %578 = vdwg.mxu0
    %579 = vmatprep.subr.mxu0 0.0
    %v580 = vand.u32 %v60, 4294901760
    %v581 = vsub.f32 %v60, %v580
    %v582 = vand.u32 %v581, 4294901760
    %583 = vmatpush1.msra.mxu0 %v582
    %584 = vmatprep.subr.mxu0 0.0
    %585 = vmatpush1.msra.mxu0 0.0
    %586 = vmatprep.subr.mxu0 0.0
    %587 = vmatpush1.msra.mxu0 0.0
    %588 = vmatprep.subr.mxu0 0.0
    %589 = vmatpush1.msra.mxu0 0.0
    %590 = vmatprep.subr.mxu0 0.0
    %591 = vmatpush1.msra.mxu0 0.0
    %592 = vmatprep.subr.mxu0 0.0
    %593 = vmatpush1.msra.mxu0 0.0
    %594 = vmatprep.subr.mxu0 0.0
    %595 = vmatpush1.msra.mxu0 0.0
    %596 = vmatprep.subr.mxu0 0.0
    %597 = vmatpush1.msra.mxu0 0.0
    %598 = vmatprep.subr.mxu0 0.0
    %599 = vmatpush1.msra.mxu0 0.0
    %600 = vmatprep.subr.mxu0 0.0
    %601 = vmatpush1.msra.mxu0 0.0
    %602 = vmatprep.subr.mxu0 0.0
    %603 = vmatpush1.msra.mxu0 0.0
    %604 = vmatprep.subr.mxu0 0.0
    %605 = vmatpush1.msra.mxu0 0.0
    %606 = vmatprep.subr.mxu0 0.0
    %607 = vmatpush1.msra.mxu0 0.0
    %608 = vmatprep.subr.mxu0 0.0
    %609 = vmatpush1.msra.mxu0 0.0
    %610 = vmatprep.subr.mxu0 0.0
    %611 = vmatpush1.msra.mxu0 0.0
    %612 = vmatprep.subr.mxu0 0.0
    %613 = vmatpush1.msra.mxu0 0.0
    %614 = vmatprep.subr.mxu0 0.0
    %615 = vmatpush1.msra.mxu0 0.0
    %616 = vmatprep.subr.mxu0 0.0
    %617 = vmatpush1.msra.mxu0 0.0
    %618 = vmatprep.subr.mxu0 0.0
    %619 = vmatpush1.msra.mxu0 0.0
    %620 = vmatprep.subr.mxu0 0.0
    %621 = vmatpush1.msra.mxu0 0.0
    %622 = vmatprep.subr.mxu0 0.0
    %623 = vmatpush1.msra.mxu0 0.0
    %624 = vmatprep.subr.mxu0 0.0
    %625 = vmatpush1.msra.mxu0 0.0
    %626 = vmatprep.subr.mxu0 0.0
    %627 = vmatpush1.msra.mxu0 0.0
    %628 = vmatprep.subr.mxu0 0.0
    %629 = vmatpush1.msra.mxu0 0.0
    %630 = vmatprep.subr.mxu0 0.0
    %631 = vmatpush1.msra.mxu0 0.0
    %632 = vmatprep.subr.mxu0 0.0
    %633 = vmatpush1.msra.mxu0 0.0
    %634 = vmatprep.subr.mxu0 0.0
    %635 = vmatpush1.msra.mxu0 0.0
    %636 = vmatprep.subr.mxu0 0.0
    %637 = vmatpush1.msra.mxu0 0.0
    %638 = vmatprep.subr.mxu0 0.0
    %639 = vmatpush1.msra.mxu0 0.0
    %640 = vmatprep.subr.mxu0 0.0
    %641 = vmatpush1.msra.mxu0 0.0
    %642 = vmatprep.subr.mxu0 0.0
    %643 = vmatpush1.msra.mxu0 0.0
    %644 = vmatprep.subr.mxu0 0.0
    %645 = vmatpush1.msra.mxu0 0.0
    %646 = vmatprep.mubr.f32.mxu0 0.0
    %v647 = vand.u32 %v35, 4294901760
    %648 = vmatmul.mubr.f32.gmra.mrb[0].mxu0 %v647
    %v649 = vpop.f32.mrb[0].mxu0
    %v650 = vadd.f32 %v520, %v649
    %v651 = vpop.f32.mrb[0].mxu0
    %652 = vmatprep.mubr.f32.mxu0 0.0
    %v653 = vand.u32 %v38, 4294901760
    %654 = vmatmul.mubr.f32.gmra.mrb[0].mxu0 %v653
    %v655 = vpop.f32.mrb[0].mxu0
    %v656 = vadd.f32 %v528, %v655
    %v657 = vpop.f32.mrb[0].mxu0
    %658 = vmatprep.mubr.f32.mxu0 0.0
    %v659 = vand.u32 %v41, 4294901760
    %660 = vmatmul.mubr.f32.gmra.mrb[0].mxu0 %v659
    %v661 = vpop.f32.mrb[0].mxu0
    %v662 = vadd.f32 %v536, %v661
    %v663 = vpop.f32.mrb[0].mxu0
    %664 = vmatprep.mubr.f32.mxu0 0.0
    %v665 = vand.u32 %v44, 4294901760
    %666 = vmatmul.mubr.f32.gmra.mrb[0].mxu0 %v665
    %v667 = vpop.f32.mrb[0].mxu0
    %v668 = vadd.f32 %v544, %v667
    %v669 = vpop.f32.mrb[0].mxu0
    %670 = vmatprep.mubr.f32.mxu0 0.0
    %v671 = vand.u32 %v47, 4294901760
    %672 = vmatmul.mubr.f32.gmra.mrb[0].mxu0 %v671
    %v673 = vpop.f32.mrb[0].mxu0
    %v674 = vadd.f32 %v552, %v673
    %v675 = vpop.f32.mrb[0].mxu0
    %676 = vmatprep.mubr.f32.mxu0 0.0
    %v677 = vand.u32 %v50, 4294901760
    %678 = vmatmul.mubr.f32.gmra.mrb[0].mxu0 %v677
    %v679 = vpop.f32.mrb[0].mxu0
    %v680 = vadd.f32 %v560, %v679
    %v681 = vpop.f32.mrb[0].mxu0
    %682 = vmatprep.mubr.f32.mxu0 0.0
    %v683 = vand.u32 %v53, 4294901760
    %684 = vmatmul.mubr.f32.gmra.mrb[0].mxu0 %v683
    %v685 = vpop.f32.mrb[0].mxu0
    %v686 = vadd.f32 %v568, %v685
    %v687 = vpop.f32.mrb[0].mxu0
    %688 = vmatprep.mubr.f32.mxu0 0.0
    %v689 = vand.u32 %v56, 4294901760
    %690 = vmatmul.mubr.f32.gmra.mrb[0].mxu0 %v689
    %v691 = vpop.f32.mrb[0].mxu0
    %v692 = vadd.f32 %v576, %v691
    %v693 = vpop.f32.mrb[0].mxu0
    %694 = vdwg.mxu0
    %695 = vmatprep.subr.mxu0 0.0
    %v696 = vand.u32 %v60, 4294901760
    %697 = vmatpush1.msra.mxu0 %v696
    %698 = vmatprep.subr.mxu0 0.0
    %699 = vmatpush1.msra.mxu0 0.0
    %700 = vmatprep.subr.mxu0 0.0
    %701 = vmatpush1.msra.mxu0 0.0
    %702 = vmatprep.subr.mxu0 0.0
    %703 = vmatpush1.msra.mxu0 0.0
    %704 = vmatprep.subr.mxu0 0.0
    %705 = vmatpush1.msra.mxu0 0.0
    %706 = vmatprep.subr.mxu0 0.0
    %707 = vmatpush1.msra.mxu0 0.0
    %708 = vmatprep.subr.mxu0 0.0
    %709 = vmatpush1.msra.mxu0 0.0
    %710 = vmatprep.subr.mxu0 0.0
    %711 = vmatpush1.msra.mxu0 0.0
    %712 = vmatprep.subr.mxu0 0.0
    %713 = vmatpush1.msra.mxu0 0.0
    %714 = vmatprep.subr.mxu0 0.0
    %715 = vmatpush1.msra.mxu0 0.0
    %716 = vmatprep.subr.mxu0 0.0
    %717 = vmatpush1.msra.mxu0 0.0
    %718 = vmatprep.subr.mxu0 0.0
    %719 = vmatpush1.msra.mxu0 0.0
    %720 = vmatprep.subr.mxu0 0.0
    %721 = vmatpush1.msra.mxu0 0.0
    %722 = vmatprep.subr.mxu0 0.0
    %723 = vmatpush1.msra.mxu0 0.0
    %724 = vmatprep.subr.mxu0 0.0
    %725 = vmatpush1.msra.mxu0 0.0
    %726 = vmatprep.subr.mxu0 0.0
    %727 = vmatpush1.msra.mxu0 0.0
    %728 = vmatprep.subr.mxu0 0.0
    %729 = vmatpush1.msra.mxu0 0.0
    %730 = vmatprep.subr.mxu0 0.0
    %731 = vmatpush1.msra.mxu0 0.0
    %732 = vmatprep.subr.mxu0 0.0
    %733 = vmatpush1.msra.mxu0 0.0
    %734 = vmatprep.subr.mxu0 0.0
    %735 = vmatpush1.msra.mxu0 0.0
    %736 = vmatprep.subr.mxu0 0.0
    %737 = vmatpush1.msra.mxu0 0.0
    %738 = vmatprep.subr.mxu0 0.0
    %739 = vmatpush1.msra.mxu0 0.0
    %740 = vmatprep.subr.mxu0 0.0
    %741 = vmatpush1.msra.mxu0 0.0
    %742 = vmatprep.subr.mxu0 0.0
    %743 = vmatpush1.msra.mxu0 0.0
    %744 = vmatprep.subr.mxu0 0.0
    %745 = vmatpush1.msra.mxu0 0.0
    %746 = vmatprep.subr.mxu0 0.0
    %747 = vmatpush1.msra.mxu0 0.0
    %748 = vmatprep.subr.mxu0 0.0
    %749 = vmatpush1.msra.mxu0 0.0
    %750 = vmatprep.subr.mxu0 0.0
    %751 = vmatpush1.msra.mxu0 0.0
    %752 = vmatprep.subr.mxu0 0.0
    %753 = vmatpush1.msra.mxu0 0.0
    %754 = vmatprep.subr.mxu0 0.0
    %755 = vmatpush1.msra.mxu0 0.0
    %756 = vmatprep.subr.mxu0 0.0
    %757 = vmatpush1.msra.mxu0 0.0
    %758 = vmatprep.subr.mxu0 0.0
    %759 = vmatpush1.msra.mxu0 0.0
    %760 = vmatprep.mubr.f32.mxu0 0.0
    %v761 = vand.u32 %v35, 4294901760
    %762 = vmatmul.mubr.f32.gmra.mrb[0].mxu0 %v761
    %v763 = vpop.f32.mrb[0].mxu0
    %v764 = vadd.f32 %v650, %v763
    %v765 = vpop.f32.mrb[0].mxu0
    %766 = vmatprep.mubr.f32.mxu0 0.0
    %v767 = vand.u32 %v38, 4294901760
    %768 = vmatmul.mubr.f32.gmra.mrb[0].mxu0 %v767
    %v769 = vpop.f32.mrb[0].mxu0
    %v770 = vadd.f32 %v656, %v769
    %v771 = vpop.f32.mrb[0].mxu0
    %772 = vmatprep.mubr.f32.mxu0 0.0
    %v773 = vand.u32 %v41, 4294901760
    %774 = vmatmul.mubr.f32.gmra.mrb[0].mxu0 %v773
    %v775 = vpop.f32.mrb[0].mxu0
    %v776 = vadd.f32 %v662, %v775
    %v777 = vpop.f32.mrb[0].mxu0
    %778 = vmatprep.mubr.f32.mxu0 0.0
    %v779 = vand.u32 %v44, 4294901760
    %780 = vmatmul.mubr.f32.gmra.mrb[0].mxu0 %v779
    %v781 = vpop.f32.mrb[0].mxu0
    %v782 = vadd.f32 %v668, %v781
    %v783 = vpop.f32.mrb[0].mxu0
    %784 = vmatprep.mubr.f32.mxu0 0.0
    %v785 = vand.u32 %v47, 4294901760
    %786 = vmatmul.mubr.f32.gmra.mrb[0].mxu0 %v785
    %v787 = vpop.f32.mrb[0].mxu0
    %v788 = vadd.f32 %v674, %v787
    %v789 = vpop.f32.mrb[0].mxu0
    %790 = vmatprep.mubr.f32.mxu0 0.0
    %v791 = vand.u32 %v50, 4294901760
    %792 = vmatmul.mubr.f32.gmra.mrb[0].mxu0 %v791
    %v793 = vpop.f32.mrb[0].mxu0
    %v794 = vadd.f32 %v680, %v793
    %v795 = vpop.f32.mrb[0].mxu0
    %796 = vmatprep.mubr.f32.mxu0 0.0
    %v797 = vand.u32 %v53, 4294901760
    %798 = vmatmul.mubr.f32.gmra.mrb[0].mxu0 %v797
    %v799 = vpop.f32.mrb[0].mxu0
    %v800 = vadd.f32 %v686, %v799
    %v801 = vpop.f32.mrb[0].mxu0
    %802 = vmatprep.mubr.f32.mxu0 0.0
    %v803 = vand.u32 %v56, 4294901760
    %804 = vmatmul.mubr.f32.gmra.mrb[0].mxu0 %v803
    %v805 = vpop.f32.mrb[0].mxu0
    %v806 = vadd.f32 %v692, %v805
    %v807 = vpop.f32.mrb[0].mxu0
    %808 = vdwg.mxu0
    %v809 = vld [vmem:[%s3] sm:$0xff]
    %v810 = vld [vmem:[%s3 + $0x8] sm:$0xff]
    %v811 = vld [vmem:[%s3 + $0x10] sm:$0xff]
    %v812 = vld [vmem:[%s3 + $0x18] sm:$0xff]
    %v813 = vld [vmem:[%s3 + $0x20] sm:$0xff]
    %v814 = vld [vmem:[%s3 + $0x28] sm:$0xff]
    %v815 = vld [vmem:[%s3 + $0x30] sm:$0xff]
    %v816 = vld [vmem:[%s3 + $0x38] sm:$0xff]
    %v817 = vld [vmem:[%s2] sm:$0xff]
    %v818 = vld [vmem:[%s2 + $0x8] sm:$0xff]
    %v819 = vld [vmem:[%s2 + $0x10] sm:$0xff]
    %v820 = vld [vmem:[%s2 + $0x18] sm:$0xff]
    %v821 = vld [vmem:[%s2 + $0x20] sm:$0xff]
    %v822 = vld [vmem:[%s2 + $0x28] sm:$0xff]
    %v823 = vld [vmem:[%s2 + $0x30] sm:$0xff]
    %v824 = vld [vmem:[%s2 + $0x38] sm:$0xff]
    %826 = vset.pattern.permute.xlu0 0
    %827 = vperm.xlu0 %826, %v817
    %v828 = vpop.permute.xlu0 %827
    %831 = vset.pattern.permute.xlu0 0
    %832 = vperm.xlu0 %831, %v818
    %v833 = vpop.permute.xlu0 %832
    %836 = vset.pattern.permute.xlu0 0
    %837 = vperm.xlu0 %836, %v819
    %v838 = vpop.permute.xlu0 %837
    %841 = vset.pattern.permute.xlu0 0
    %842 = vperm.xlu0 %841, %v820
    %v843 = vpop.permute.xlu0 %842
    %846 = vset.pattern.permute.xlu0 0
    %847 = vperm.xlu0 %846, %v821
    %v848 = vpop.permute.xlu0 %847
    %851 = vset.pattern.permute.xlu0 0
    %852 = vperm.xlu0 %851, %v822
    %v853 = vpop.permute.xlu0 %852
    %856 = vset.pattern.permute.xlu0 0
    %857 = vperm.xlu0 %856, %v823
    %v858 = vpop.permute.xlu0 %857
    %861 = vset.pattern.permute.xlu0 0
    %862 = vperm.xlu0 %861, %v824
    %v863 = vpop.permute.xlu0 %862
    %v865 = vsub.f32 %v764, %v828
    %v866 = vsub.f32 %v770, %v833
    %v867 = vsub.f32 %v776, %v838
    %v868 = vsub.f32 %v782, %v843
    %v869 = vsub.f32 %v788, %v848
    %v870 = vsub.f32 %v794, %v853
    %v871 = vsub.f32 %v800, %v858
    %v872 = vsub.f32 %v806, %v863
    %v873 = vmul.f32 %v865, %v865
    %v874 = vmul.f32 %v866, %v866
    %v875 = vmul.f32 %v867, %v867
    %v876 = vmul.f32 %v868, %v868
    %v877 = vmul.f32 %v869, %v869
    %v878 = vmul.f32 %v870, %v870
    %v879 = vmul.f32 %v871, %v871
    %v880 = vmul.f32 %v872, %v872
    %882 = vset.pattern.permute.xlu0 0
    %883 = vperm.xlu0 %882, %v809
    %v884 = vpop.permute.xlu0 %883
    %887 = vset.pattern.permute.xlu0 0
    %888 = vperm.xlu0 %887, %v810
    %v889 = vpop.permute.xlu0 %888
    %892 = vset.pattern.permute.xlu0 0
    %893 = vperm.xlu0 %892, %v811
    %v894 = vpop.permute.xlu0 %893
    %897 = vset.pattern.permute.xlu0 0
    %898 = vperm.xlu0 %897, %v812
    %v899 = vpop.permute.xlu0 %898
    %902 = vset.pattern.permute.xlu0 0
    %903 = vperm.xlu0 %902, %v813
    %v904 = vpop.permute.xlu0 %903
    %907 = vset.pattern.permute.xlu0 0
    %908 = vperm.xlu0 %907, %v814
    %v909 = vpop.permute.xlu0 %908
    %912 = vset.pattern.permute.xlu0 0
    %913 = vperm.xlu0 %912, %v815
    %v914 = vpop.permute.xlu0 %913
    %917 = vset.pattern.permute.xlu0 0
    %918 = vperm.xlu0 %917, %v816
    %v919 = vpop.permute.xlu0 %918
    %v921 = vmul.f32 %v884, %v873
    %v922 = vmul.f32 %v889, %v874
    %v923 = vmul.f32 %v894, %v875
    %v924 = vmul.f32 %v899, %v876
    %v925 = vmul.f32 %v904, %v877
    %v926 = vmul.f32 %v909, %v878
    %v927 = vmul.f32 %v914, %v879
    %v928 = vmul.f32 %v919, %v880
    %v929 = vmul.f32 %v921, 1.442695
    %v930 = vpow.pop %v929
    %v931 = vmul.f32 %v922, 1.442695
    %v932 = vpow.pop %v931
    %v933 = vmul.f32 %v923, 1.442695
    %v934 = vpow.pop %v933
    %v935 = vmul.f32 %v924, 1.442695
    %v936 = vpow.pop %v935
    %v937 = vmul.f32 %v925, 1.442695
    %v938 = vpow.pop %v937
    %v939 = vmul.f32 %v926, 1.442695
    %v940 = vpow.pop %v939
    %v941 = vmul.f32 %v927, 1.442695
    %v942 = vpow.pop %v941
    %v943 = vmul.f32 %v928, 1.442695
    %v944 = vpow.pop %v943
    %v945 = vld [vmem:[%s4] sm:$0xff]
    %v946 = vld [vmem:[%s4 + $0x8] sm:$0xff]
    %v947 = vld [vmem:[%s4 + $0x10] sm:$0xff]
    %v948 = vld [vmem:[%s4 + $0x18] sm:$0xff]
    %vm949 = vcmask 523264
    %v951 = vsel %vm949, %v945, 0
    %v954 = vsel %vm949, %v946, 0
    %v957 = vsel %vm949, %v947, 0
    %v960 = vsel %vm949, %v948, 0
    %962 = vmatprep.subr.mxu0 0.0
    %963 = vmatpush1.msra.mxu0 %v930
    %964 = vmatprep.subr.mxu0 0.0
    %965 = vmatpush1.msra.mxu0 %v932
    %966 = vmatprep.subr.mxu0 0.0
    %967 = vmatpush1.msra.mxu0 %v934
    %968 = vmatprep.subr.mxu0 0.0
    %969 = vmatpush1.msra.mxu0 %v936
    %970 = vmatprep.subr.mxu0 0.0
    %971 = vmatpush1.msra.mxu0 %v938
    %972 = vmatprep.subr.mxu0 0.0
    %973 = vmatpush1.msra.mxu0 %v940
    %974 = vmatprep.subr.mxu0 0.0
    %975 = vmatpush1.msra.mxu0 %v942
    %976 = vmatprep.subr.mxu0 0.0
    %977 = vmatpush1.msra.mxu0 %v944
    %978 = vmatprep.subr.mxu0 0.0
    %979 = vmatpush1.msra.mxu0 0.0
    %980 = vmatprep.subr.mxu0 0.0
    %981 = vmatpush1.msra.mxu0 0.0
    %982 = vmatprep.subr.mxu0 0.0
    %983 = vmatpush1.msra.mxu0 0.0
    %984 = vmatprep.subr.mxu0 0.0
    %985 = vmatpush1.msra.mxu0 0.0
    %986 = vmatprep.subr.mxu0 0.0
    %987 = vmatpush1.msra.mxu0 0.0
    %988 = vmatprep.subr.mxu0 0.0
    %989 = vmatpush1.msra.mxu0 0.0
    %990 = vmatprep.subr.mxu0 0.0
    %991 = vmatpush1.msra.mxu0 0.0
    %992 = vmatprep.subr.mxu0 0.0
    %993 = vmatpush1.msra.mxu0 0.0
    %994 = vmatprep.subr.mxu0 0.0
    %995 = vmatpush1.msra.mxu0 0.0
    %996 = vmatprep.subr.mxu0 0.0
    %997 = vmatpush1.msra.mxu0 0.0
    %998 = vmatprep.subr.mxu0 0.0
    %999 = vmatpush1.msra.mxu0 0.0
    %1000 = vmatprep.subr.mxu0 0.0
    %1001 = vmatpush1.msra.mxu0 0.0
    %1002 = vmatprep.subr.mxu0 0.0
    %1003 = vmatpush1.msra.mxu0 0.0
    %1004 = vmatprep.subr.mxu0 0.0
    %1005 = vmatpush1.msra.mxu0 0.0
    %1006 = vmatprep.subr.mxu0 0.0
    %1007 = vmatpush1.msra.mxu0 0.0
    %1008 = vmatprep.subr.mxu0 0.0
    %1009 = vmatpush1.msra.mxu0 0.0
    %1010 = vmatprep.subr.mxu0 0.0
    %1011 = vmatpush1.msra.mxu0 0.0
    %1012 = vmatprep.subr.mxu0 0.0
    %1013 = vmatpush1.msra.mxu0 0.0
    %1014 = vmatprep.subr.mxu0 0.0
    %1015 = vmatpush1.msra.mxu0 0.0
    %1016 = vmatprep.subr.mxu0 0.0
    %1017 = vmatpush1.msra.mxu0 0.0
    %1018 = vmatprep.subr.mxu0 0.0
    %1019 = vmatpush1.msra.mxu0 0.0
    %1020 = vmatprep.subr.mxu0 0.0
    %1021 = vmatpush1.msra.mxu0 0.0
    %1022 = vmatprep.subr.mxu0 0.0
    %1023 = vmatpush1.msra.mxu0 0.0
    %1024 = vmatprep.subr.mxu0 0.0
    %1025 = vmatpush1.msra.mxu0 0.0
    %1026 = vmatprep.mubr.f32.mxu0 0.0
    %1027 = vmatmul.mubr.f32.gmra.mrb[0].mxu0 %v951
    %v1028 = vpop.f32.mrb[0].mxu0
    %v1029 = vadd.f32 0.0, %v1028
    %v1030 = vpop.f32.mrb[0].mxu0
    %1031 = vmatprep.mubr.f32.mxu0 0.0
    %1032 = vmatmul.mubr.f32.gmra.mrb[0].mxu0 %v954
    %v1033 = vpop.f32.mrb[0].mxu0
    %v1034 = vadd.f32 0.0, %v1033
    %v1035 = vpop.f32.mrb[0].mxu0
    %1036 = vmatprep.mubr.f32.mxu0 0.0
    %1037 = vmatmul.mubr.f32.gmra.mrb[0].mxu0 %v957
    %v1038 = vpop.f32.mrb[0].mxu0
    %v1039 = vadd.f32 0.0, %v1038
    %v1040 = vpop.f32.mrb[0].mxu0
    %1041 = vmatprep.mubr.f32.mxu0 0.0
    %1042 = vmatmul.mubr.f32.gmra.mrb[0].mxu0 %v960
    %v1043 = vpop.f32.mrb[0].mxu0
    %v1044 = vadd.f32 0.0, %v1043
    %v1045 = vpop.f32.mrb[0].mxu0
    %1046 = vdwg.mxu0
    %1047 = vxpose.xlu0.b32.start [1/16] %v1029, 128
    %1048 = vxpose.xlu0.b32.cont [2/16] %v1034, 128
    %1049 = vxpose.xlu0.b32.cont [3/16] %v1039, 128
    %1050 = vxpose.xlu0.b32.cont [4/16] %v1044, 128
    %1051 = vxpose.xlu0.b32.cont [5/16] 0.0, 128
    %1052 = vxpose.xlu0.b32.cont [6/16] 0.0, 128
    %1053 = vxpose.xlu0.b32.cont [7/16] 0.0, 128
    %1054 = vxpose.xlu0.b32.cont [8/16] 0.0, 128
    %1055 = vxpose.xlu0.b32.cont [9/16] 0.0, 128
    %1056 = vxpose.xlu0.b32.cont [10/16] 0.0, 128
    %1057 = vxpose.xlu0.b32.cont [11/16] 0.0, 128
    %1058 = vxpose.xlu0.b32.cont [12/16] 0.0, 128
    %1059 = vxpose.xlu0.b32.cont [13/16] 0.0, 128
    %1060 = vxpose.xlu0.b32.cont [14/16] 0.0, 128
    %1061 = vxpose.xlu0.b32.cont [15/16] 0.0, 128
    %1062 = vxpose.xlu0.b32.end [16/16] 0.0, 128
    %v1063 = vpop.trf.xlu0
    %v1064 = vpop.trf.xlu0
    %v1065 = vpop.trf.xlu0
    %v1066 = vpop.trf.xlu0
    %v1067 = vpop.trf.xlu0
    %v1068 = vpop.trf.xlu0
    %v1069 = vpop.trf.xlu0
    %v1070 = vpop.trf.xlu0
    %v1071 = vpop.trf.xlu0
    %v1072 = vpop.trf.xlu0
    %v1073 = vpop.trf.xlu0
    %v1074 = vpop.trf.xlu0
    %v1075 = vpop.trf.xlu0
    %v1076 = vpop.trf.xlu0
    %v1077 = vpop.trf.xlu0
    %v1078 = vpop.trf.xlu0
    %v1079 = vld [vmem:[%s5] sm:$0x1]
    %v1081 = vlaneseq
    %v1082 = vshrl.u32 %v1081, 7
    %v1083 = vsub.s32 0, %v1082
    %v1084 = vrot.slane %v1079, %v1083
    %v1086 = vadd.f32 %v1063, %v1084
    %v1087 = vadd.f32 %v1064, %v1084
    %v1088 = vadd.f32 %v1065, %v1084
    %v1089 = vadd.f32 %v1066, %v1084
    %v1090 = vadd.f32 %v1067, %v1084
    %v1091 = vadd.f32 %v1068, %v1084
    %v1092 = vadd.f32 %v1069, %v1084
    %v1093 = vadd.f32 %v1070, %v1084
    %v1094 = vadd.f32 %v1071, %v1084
    %v1095 = vadd.f32 %v1072, %v1084
    %v1096 = vadd.f32 %v1073, %v1084
    %v1097 = vadd.f32 %v1074, %v1084
    %v1098 = vadd.f32 %v1075, %v1084
    %v1099 = vadd.f32 %v1076, %v1084
    %v1100 = vadd.f32 %v1077, %v1084
    %v1101 = vadd.f32 %v1078, %v1084
    %vm1102 = vcmask 261120
    %1103 = vst.msk [vmem:[#allocation2] sm:$0xff] %vm1102, %v1086
    %1104 = vst.msk [vmem:[#allocation2 + $0x8] sm:$0xff] %vm1102, %v1087
    %1105 = vst.msk [vmem:[#allocation2 + $0x10] sm:$0xff] %vm1102, %v1088
    %1106 = vst.msk [vmem:[#allocation2 + $0x18] sm:$0xff] %vm1102, %v1089
    %1107 = vst.msk [vmem:[#allocation2 + $0x20] sm:$0xff] %vm1102, %v1090
    %1108 = vst.msk [vmem:[#allocation2 + $0x28] sm:$0xff] %vm1102, %v1091
    %1109 = vst.msk [vmem:[#allocation2 + $0x30] sm:$0xff] %vm1102, %v1092
    %1110 = vst.msk [vmem:[#allocation2 + $0x38] sm:$0xff] %vm1102, %v1093
    %1111 = vst.msk [vmem:[#allocation2 + $0x40] sm:$0xff] %vm1102, %v1094
    %1112 = vst.msk [vmem:[#allocation2 + $0x48] sm:$0xff] %vm1102, %v1095
    %1113 = vst.msk [vmem:[#allocation2 + $0x50] sm:$0xff] %vm1102, %v1096
    %1114 = vst.msk [vmem:[#allocation2 + $0x58] sm:$0xff] %vm1102, %v1097
    %1115 = vst.msk [vmem:[#allocation2 + $0x60] sm:$0xff] %vm1102, %v1098
    %1116 = vst.msk [vmem:[#allocation2 + $0x68] sm:$0xff] %vm1102, %v1099
    %1117 = vst.msk [vmem:[#allocation2 + $0x70] sm:$0xff] %vm1102, %v1100
    %1118 = vst.msk [vmem:[#allocation2 + $0x78] sm:$0xff] %vm1102, %v1101
    // Predicated region
    $region26: #{tpu_custom_call.1} parent=1 // pred_check
      _
    $region27: #{tpu_custom_call.1} parent=1 // pred_check_branch
      %1120 = sbr.rel (0) target = $region29
    $region28: #{tpu_custom_call.1} parent=1 // pred_region
      %s1122 = ssub.s32 2048, 256
      %1123 = vsyncadd [#allocation3], %s1122
      %s1124 = sshll.u32 [#allocation2], 4
      %s1125 = int_to_ptr.vmem [resolvable:$true] %s1124
      %1130 = dma.vmem_to_hbm [thread:$0]  %s1125, 256, %s6, [#allocation3], 128, 128, 8
    $region29: #{tpu_custom_call.1} parent=1 // pred_fallthru
      _
    // Predicated region
    $region30: #{tpu_custom_call.1} parent=1 // pred_check
      _
    $region31: #{tpu_custom_call.1} parent=1 // pred_check_branch
      %1132 = sbr.rel (0) target = $region33
    $region32: #{tpu_custom_call.1} parent=1 // pred_region
      %1133 = dma.done [#allocation3], 2048
    $region33: #{tpu_custom_call.1} parent=1 // pred_fallthru
      _
    %1134 = vsyncpa [#allocation3], 1

</llo_original>
